<compile_context>
chip_gen: v7x
topology: tpu7x:2x2x1
jax: 0.10.0
libtpu: 0.0.40
codegen_flags: <defaults>
</compile_context>

<pallas_src>
import functools

import jax
import jax.numpy as jnp
from jax.experimental import pallas as pl
from jax.experimental.pallas import tpu as pltpu


def _rnn_fc_kernel(x_ref, wih_ref, brnn_ref, whh_ref, wfc_ref, bfc_ref,
                   out_ref, *, steps, n_rows):
    """Fused input projection + tanh-RNN recurrence + Linear head.

    x_ref   : (S*Np, Fp)  time-major input, rows [t*Np:(t+1)*Np] are step t
    wih_ref : (Fp, Hp)    W_ih^T zero-padded
    brnn_ref: (1, Hp)     b_ih + b_hh zero-padded
    whh_ref : (Hp, Hp)    W_hh^T zero-padded
    wfc_ref : (Hp, Op)    W_fc^T zero-padded
    bfc_ref : (1, Op)     b_fc zero-padded
    out_ref : (S*Np, Op)  time-major stacked fc outputs (lane-dense slab)
    """
    # Input projection for all S time steps in one MXU pass (hoisted out of
    # the serial recurrence).
    xw = (jnp.dot(x_ref[...], wih_ref[...], preferred_element_type=jnp.float32)
          + brnn_ref[...])                                   # (S*Np, Hp)
    whh = whh_ref[...]

    # Step 0: h_0 = 0, so the W_hh term vanishes.
    h = jnp.tanh(xw[0:n_rows, :])
    hs = [h]
    # Static unroll of the short fixed-length recurrence (S <= 5).  Row slices
    # are sublane-aligned (n_rows is a multiple of 8).
    for t in range(1, steps):
        xw_t = xw[t * n_rows:(t + 1) * n_rows, :]
        h = jnp.tanh(xw_t
                     + jnp.dot(h, whh, preferred_element_type=jnp.float32))
        hs.append(h)

    h_all = jnp.concatenate(hs, axis=0)                      # (S*Np, Hp)
    out_ref[...] = (jnp.dot(h_all, wfc_ref[...],
                            preferred_element_type=jnp.float32)
                    + bfc_ref[...])


def _round_up(v, m):
    return max(m, ((v + m - 1) // m) * m)


def rnn_forward(x, params, output_size):
    """x: (N, T, F) float32, batch-first. Returns (N, min(T, 5), output_size)."""
    N, T, F = x.shape
    H = params["w_hh"].shape[0]
    S = min(T, 5)                       # fc only consumes out[:, :5, :]
    Np = _round_up(N, 8)                # full sublane tile
    Fp = _round_up(F, 128)              # lane-dense contraction dim
    Hp = _round_up(H, 128)              # lane-dense hidden dim
    Op = _round_up(output_size, 128)    # lane-dense output slab

    # Time-major, tile-padded input: (S*Np, Fp).  Tiny tensors; XLA fuses.
    x_sl = x[:, :S, :].astype(jnp.float32)
    x_pad = jnp.pad(x_sl, ((0, Np - N), (0, 0), (0, Fp - F)))
    x_tm = jnp.transpose(x_pad, (1, 0, 2)).reshape(S * Np, Fp)

    # Zero-padded, pre-transposed weights (padding is exact: tanh(0)=0 and the
    # padded rows/cols are zero, so padded lanes stay zero through the net).
    wih = jnp.pad(params["w_ih"].T.astype(jnp.float32),
                  ((0, Fp - F), (0, Hp - H)))                 # (Fp, Hp)
    brnn = jnp.pad((params["b_ih"] + params["b_hh"]).astype(jnp.float32),
                   (0, Hp - H)).reshape(1, Hp)
    whh = jnp.pad(params["w_hh"].T.astype(jnp.float32),
                  ((0, Hp - H), (0, Hp - H)))                 # (Hp, Hp)
    wfc = jnp.pad(params["w_fc"].T.astype(jnp.float32),
                  ((0, Hp - H), (0, Op - output_size)))       # (Hp, Op)
    bfc = jnp.pad(params["b_fc"].astype(jnp.float32),
                  (0, Op - output_size)).reshape(1, Op)

    kernel = functools.partial(_rnn_fc_kernel, steps=S, n_rows=Np)
    out_flat = pl.pallas_call(
        kernel,
        out_shape=jax.ShapeDtypeStruct((S * Np, Op), jnp.float32),
        in_specs=[pl.BlockSpec(memory_space=pltpu.MemorySpace.VMEM)] * 6,
        out_specs=pl.BlockSpec(memory_space=pltpu.MemorySpace.VMEM),
    )(x_tm, wih, brnn, whh, wfc, bfc)

    # (S*Np, Op) time-major slab -> (N, S, output_size)
    out = out_flat.reshape(S, Np, Op)[:, :N, :output_size]
    return jnp.transpose(out, (1, 0, 2))


def init_params(key, input_size, hidden, output_size):
    """PyTorch-default uniform(-1/sqrt(fan), 1/sqrt(fan)) init."""
    ks = jax.random.split(key, 6)

    def u(k, shape, bound):
        return jax.random.uniform(k, shape, jnp.float32, -bound, bound)

    s = 1.0 / float(hidden) ** 0.5
    return {
        "w_ih": u(ks[0], (hidden, input_size), s),
        "w_hh": u(ks[1], (hidden, hidden), s),
        "b_ih": u(ks[2], (hidden,), s),
        "b_hh": u(ks[3], (hidden,), s),
        "w_fc": u(ks[4], (output_size, hidden), s),
        "b_fc": u(ks[5], (output_size,), s),
    }


def _reference(x, params):
    """Pure-JAX transcription of the PyTorch forward (full-length recurrence)."""
    N, T, _ = x.shape
    H = params["w_hh"].shape[0]
    h = jnp.zeros((N, H), jnp.float32)
    outs = []
    for t in range(T):
        h = jnp.tanh(x[:, t, :] @ params["w_ih"].T + params["b_ih"]
                     + h @ params["w_hh"].T + params["b_hh"])
        outs.append(h)
    out = jnp.stack(outs, axis=1)[:, :5, :]
    return out @ params["w_fc"].T + params["b_fc"]


if __name__ == "__main__":
    # Small shapes consistent with the module's forward.
    N, T = 2, 8                 # batch, sequence length
    input_size = 4
    hidden = 32
    output_size = 4

    key = jax.random.PRNGKey(0)
    k_x, k_p = jax.random.split(key)
    x = jax.random.normal(k_x, (N, T, input_size), jnp.float32)
    params = init_params(k_p, input_size, hidden, output_size)

    fwd = jax.jit(functools.partial(rnn_forward, output_size=output_size))
    out = jax.block_until_ready(fwd(x, params))

    ref = _reference(x, params)
    assert out.shape == (N, 5, output_size), out.shape
    assert jnp.allclose(out, ref, atol=1e-5, rtol=1e-5), "mismatch vs reference"

    print("KERNEL_OK")
</pallas_src>

<mosaic_0001>
module attributes {stable_mosaic.version = 11 : i64} {
  func.func @_rnn_fc_kernel(%arg0: memref<40x128xf32, #tpu.memory_space<vmem>>, %arg1: memref<128x128xf32, #tpu.memory_space<vmem>>, %arg2: memref<1x128xf32, #tpu.memory_space<vmem>>, %arg3: memref<128x128xf32, #tpu.memory_space<vmem>>, %arg4: memref<128x128xf32, #tpu.memory_space<vmem>>, %arg5: memref<1x128xf32, #tpu.memory_space<vmem>>, %arg6: memref<40x128xf32, #tpu.memory_space<vmem>>) attributes {dimension_semantics = [], scalar_prefetch = 0 : i64, scratch_operands = 0 : i64, tpu.core_type = #tpu.core_type<tc>} {
    %c0 = arith.constant 0 : index
    %c0_0 = arith.constant 0 : index
    %0 = vector.load %arg0[%c0, %c0_0] : memref<40x128xf32, #tpu.memory_space<vmem>>, vector<40x128xf32>
    %c0_1 = arith.constant 0 : index
    %c0_2 = arith.constant 0 : index
    %1 = vector.load %arg1[%c0_1, %c0_2] : memref<128x128xf32, #tpu.memory_space<vmem>>, vector<128x128xf32>
    %cst = arith.constant dense<0.000000e+00> : vector<40x128xf32>
    %2 = tpu.matmul %0, %1, %cst {dimension_numbers = #tpu.dot_dimension_numbers<[1], [0], [0], [1], [0, 0, 1, 1], [], []>} : vector<40x128xf32>, vector<128x128xf32>, vector<40x128xf32> -> vector<40x128xf32>
    %c0_3 = arith.constant 0 : index
    %c0_4 = arith.constant 0 : index
    %3 = vector.load %arg2[%c0_3, %c0_4] : memref<1x128xf32, #tpu.memory_space<vmem>>, vector<1x128xf32>
    %4 = vector.broadcast %3 : vector<1x128xf32> to vector<40x128xf32>
    %5 = arith.addf %2, %4 : vector<40x128xf32>
    %c0_5 = arith.constant 0 : index
    %c0_6 = arith.constant 0 : index
    %6 = vector.load %arg3[%c0_5, %c0_6] : memref<128x128xf32, #tpu.memory_space<vmem>>, vector<128x128xf32>
    %7 = vector.extract_strided_slice %5 {offsets = [0, 0], sizes = [8, 128], strides = [1, 1]} : vector<40x128xf32> to vector<8x128xf32>
    %8 = math.tanh %7 : vector<8x128xf32>
    %9 = vector.extract_strided_slice %5 {offsets = [8, 0], sizes = [8, 128], strides = [1, 1]} : vector<40x128xf32> to vector<8x128xf32>
    %cst_7 = arith.constant dense<0.000000e+00> : vector<8x128xf32>
    %10 = tpu.matmul %8, %6, %cst_7 {dimension_numbers = #tpu.dot_dimension_numbers<[1], [0], [0], [1], [0, 0, 1, 1], [], []>} : vector<8x128xf32>, vector<128x128xf32>, vector<8x128xf32> -> vector<8x128xf32>
    %11 = arith.addf %9, %10 : vector<8x128xf32>
    %12 = math.tanh %11 : vector<8x128xf32>
    %13 = vector.extract_strided_slice %5 {offsets = [16, 0], sizes = [8, 128], strides = [1, 1]} : vector<40x128xf32> to vector<8x128xf32>
    %cst_8 = arith.constant dense<0.000000e+00> : vector<8x128xf32>
    %14 = tpu.matmul %12, %6, %cst_8 {dimension_numbers = #tpu.dot_dimension_numbers<[1], [0], [0], [1], [0, 0, 1, 1], [], []>} : vector<8x128xf32>, vector<128x128xf32>, vector<8x128xf32> -> vector<8x128xf32>
    %15 = arith.addf %13, %14 : vector<8x128xf32>
    %16 = math.tanh %15 : vector<8x128xf32>
    %17 = vector.extract_strided_slice %5 {offsets = [24, 0], sizes = [8, 128], strides = [1, 1]} : vector<40x128xf32> to vector<8x128xf32>
    %cst_9 = arith.constant dense<0.000000e+00> : vector<8x128xf32>
    %18 = tpu.matmul %16, %6, %cst_9 {dimension_numbers = #tpu.dot_dimension_numbers<[1], [0], [0], [1], [0, 0, 1, 1], [], []>} : vector<8x128xf32>, vector<128x128xf32>, vector<8x128xf32> -> vector<8x128xf32>
    %19 = arith.addf %17, %18 : vector<8x128xf32>
    %20 = math.tanh %19 : vector<8x128xf32>
    %21 = vector.extract_strided_slice %5 {offsets = [32, 0], sizes = [8, 128], strides = [1, 1]} : vector<40x128xf32> to vector<8x128xf32>
    %cst_10 = arith.constant dense<0.000000e+00> : vector<8x128xf32>
    %22 = tpu.matmul %20, %6, %cst_10 {dimension_numbers = #tpu.dot_dimension_numbers<[1], [0], [0], [1], [0, 0, 1, 1], [], []>} : vector<8x128xf32>, vector<128x128xf32>, vector<8x128xf32> -> vector<8x128xf32>
    %23 = arith.addf %21, %22 : vector<8x128xf32>
    %24 = math.tanh %23 : vector<8x128xf32>
    %25 = tpu.concatenate %8, %12, %16, %20, %24 in 0 : vector<8x128xf32>, vector<8x128xf32>, vector<8x128xf32>, vector<8x128xf32>, vector<8x128xf32> -> vector<40x128xf32>
    %c0_11 = arith.constant 0 : index
    %c0_12 = arith.constant 0 : index
    %26 = vector.load %arg4[%c0_11, %c0_12] : memref<128x128xf32, #tpu.memory_space<vmem>>, vector<128x128xf32>
    %cst_13 = arith.constant dense<0.000000e+00> : vector<40x128xf32>
    %27 = tpu.matmul %25, %26, %cst_13 {dimension_numbers = #tpu.dot_dimension_numbers<[1], [0], [0], [1], [0, 0, 1, 1], [], []>} : vector<40x128xf32>, vector<128x128xf32>, vector<40x128xf32> -> vector<40x128xf32>
    %c0_14 = arith.constant 0 : index
    %c0_15 = arith.constant 0 : index
    %28 = vector.load %arg5[%c0_14, %c0_15] : memref<1x128xf32, #tpu.memory_space<vmem>>, vector<1x128xf32>
    %29 = vector.broadcast %28 : vector<1x128xf32> to vector<40x128xf32>
    %30 = arith.addf %27, %29 : vector<40x128xf32>
    %c0_16 = arith.constant 0 : index
    %c0_17 = arith.constant 0 : index
    %31 = vector.load %arg6[%c0_16, %c0_17] : memref<40x128xf32, #tpu.memory_space<vmem>>, vector<40x128xf32>
    tpu.vector_store %arg6[%c0_16, %c0_17], %30 {strides = array<i32>} : memref<40x128xf32, #tpu.memory_space<vmem>>, vector<40x128xf32>,
    return
  }
}

</mosaic_0001>

<llo_original>
// kernel: rnn_forward.1
$region0: #{rnn_forward.1}
  #allocation0 [shape = 'u32[]', space=smem, size = 0x4, offset = 0x4, fixed_abs, tag = 'smem constant byte address 0x4 - core index']
  #allocation1 [shape = 'u32[144,128]{1,0:T(1,128)}', space=vmem, size = 0x12000, scoped, tag = 'internal scratch']
  %s0 = inlined_call_operand.vmem [shape: f32[40,128], index: 0, kind: input, shape index: {}]
  %s1 = inlined_call_operand.vmem [shape: f32[128,128], index: 1, kind: input, shape index: {}]
  %s2 = inlined_call_operand.vmem [shape: f32[1,128], index: 2, kind: input, shape index: {}]
  %s3 = inlined_call_operand.vmem [shape: f32[128,128], index: 3, kind: input, shape index: {}]
  %s4 = inlined_call_operand.vmem [shape: f32[128,128], index: 4, kind: input, shape index: {}]
  %s5 = inlined_call_operand.vmem [shape: f32[1,128], index: 5, kind: input, shape index: {}]
  %s6 = inlined_call_operand.vmem [shape: f32[40,128], index: 6, kind: output, shape index: {}]
  %s7 = sld [smem:[#allocation0]]
  $region34: #{rnn_forward.1} parent=0
    _
  %s9 = ssub.s32 1, %s7
  %s10 = scalar_select 0, %s9, %s7
  // Predicated region
  $region2: #{rnn_forward.1} parent=0 // pred_check
    _
  $region3: #{rnn_forward.1} parent=0 // pred_check_branch
    %12 = sbr.rel (0) target = $region5
  $region4: #{rnn_forward.1} parent=0 // pred_region
    _
  $region5: #{rnn_forward.1} parent=0 // pred_fallthru
    _
  // Predicated region
  $region6: #{rnn_forward.1} parent=0 // pred_check
    _
  $region7: #{rnn_forward.1} parent=0 // pred_check_branch
    %14 = sbr.rel (0) target = $region9
  $region8: #{rnn_forward.1} parent=0 // pred_region
    _
  $region9: #{rnn_forward.1} parent=0 // pred_fallthru
    _
  // Predicated region
  $region10: #{rnn_forward.1} parent=0 // pred_check
    _
  $region11: #{rnn_forward.1} parent=0 // pred_check_branch
    %16 = sbr.rel (0) target = $region13
  $region12: #{rnn_forward.1} parent=0 // pred_region
    _
  $region13: #{rnn_forward.1} parent=0 // pred_fallthru
    _
  // Predicated region
  $region14: #{rnn_forward.1} parent=0 // pred_check
    _
  $region15: #{rnn_forward.1} parent=0 // pred_check_branch
    %18 = sbr.rel (0) target = $region17
  $region16: #{rnn_forward.1} parent=0 // pred_region
    _
  $region17: #{rnn_forward.1} parent=0 // pred_fallthru
    _
  // Predicated region
  $region18: #{rnn_forward.1} parent=0 // pred_check
    _
  $region19: #{rnn_forward.1} parent=0 // pred_check_branch
    %20 = sbr.rel (0) target = $region21
  $region20: #{rnn_forward.1} parent=0 // pred_region
    _
  $region21: #{rnn_forward.1} parent=0 // pred_fallthru
    _
  // Predicated region
  $region22: #{rnn_forward.1} parent=0 // pred_check
    _
  $region23: #{rnn_forward.1} parent=0 // pred_check_branch
    %22 = sbr.rel (0) target = $region25
  $region24: #{rnn_forward.1} parent=0 // pred_region
    _
  $region25: #{rnn_forward.1} parent=0 // pred_fallthru
    _
  %v23 = vld [vmem:[%s0] sm:$0xff]
  %v24 = vld [vmem:[%s0 + $0x8] sm:$0xff]
  %v25 = vld [vmem:[%s0 + $0x10] sm:$0xff]
  %v26 = vld [vmem:[%s0 + $0x18] sm:$0xff]
  %v27 = vld [vmem:[%s0 + $0x20] sm:$0xff]
  %v28 = vld [vmem:[%s1] sm:$0xff]
  %v29 = vld [vmem:[%s1 + $0x8] sm:$0xff]
  %v30 = vld [vmem:[%s1 + $0x10] sm:$0xff]
  %v31 = vld [vmem:[%s1 + $0x18] sm:$0xff]
  %v32 = vld [vmem:[%s1 + $0x20] sm:$0xff]
  %v33 = vld [vmem:[%s1 + $0x28] sm:$0xff]
  %v34 = vld [vmem:[%s1 + $0x30] sm:$0xff]
  %v35 = vld [vmem:[%s1 + $0x38] sm:$0xff]
  %v36 = vld [vmem:[%s1 + $0x40] sm:$0xff]
  %v37 = vld [vmem:[%s1 + $0x48] sm:$0xff]
  %v38 = vld [vmem:[%s1 + $0x50] sm:$0xff]
  %v39 = vld [vmem:[%s1 + $0x58] sm:$0xff]
  %v40 = vld [vmem:[%s1 + $0x60] sm:$0xff]
  %v41 = vld [vmem:[%s1 + $0x68] sm:$0xff]
  %v42 = vld [vmem:[%s1 + $0x70] sm:$0xff]
  %v43 = vld [vmem:[%s1 + $0x78] sm:$0xff]
  %v44 = vld [vmem:[%s2] sm:$0x1]
  %v46 = vlaneseq
  %v47 = vshrl.u32 %v46, 7
  %v48 = vsub.s32 0, %v47
  %v49 = vrot.slane %v44, %v48
  %51 = vmatprep.subr.mxu0 0.0
  %52 = vmatpush1.msra.mxu0 %v28
  %53 = vmatprep.subr.mxu0 0.0
  %54 = vmatpush1.msra.mxu0 %v29
  %55 = vmatprep.subr.mxu0 0.0
  %56 = vmatpush1.msra.mxu0 %v30
  %57 = vmatprep.subr.mxu0 0.0
  %58 = vmatpush1.msra.mxu0 %v31
  %59 = vmatprep.subr.mxu0 0.0
  %60 = vmatpush1.msra.mxu0 %v32
  %61 = vmatprep.subr.mxu0 0.0
  %62 = vmatpush1.msra.mxu0 %v33
  %63 = vmatprep.subr.mxu0 0.0
  %64 = vmatpush1.msra.mxu0 %v34
  %65 = vmatprep.subr.mxu0 0.0
  %66 = vmatpush1.msra.mxu0 %v35
  %67 = vmatprep.subr.mxu0 0.0
  %68 = vmatpush1.msra.mxu0 %v36
  %69 = vmatprep.subr.mxu0 0.0
  %70 = vmatpush1.msra.mxu0 %v37
  %71 = vmatprep.subr.mxu0 0.0
  %72 = vmatpush1.msra.mxu0 %v38
  %73 = vmatprep.subr.mxu0 0.0
  %74 = vmatpush1.msra.mxu0 %v39
  %75 = vmatprep.subr.mxu0 0.0
  %76 = vmatpush1.msra.mxu0 %v40
  %77 = vmatprep.subr.mxu0 0.0
  %78 = vmatpush1.msra.mxu0 %v41
  %79 = vmatprep.subr.mxu0 0.0
  %80 = vmatpush1.msra.mxu0 %v42
  %81 = vmatprep.subr.mxu0 0.0
  %82 = vmatpush1.msra.mxu0 %v43
  %83 = vmatprep.subr.mxu0 0.0
  %84 = vmatpush1.msra.mxu0 0.0
  %85 = vmatprep.subr.mxu0 0.0
  %86 = vmatpush1.msra.mxu0 0.0
  %87 = vmatprep.subr.mxu0 0.0
  %88 = vmatpush1.msra.mxu0 0.0
  %89 = vmatprep.subr.mxu0 0.0
  %90 = vmatpush1.msra.mxu0 0.0
  %91 = vmatprep.subr.mxu0 0.0
  %92 = vmatpush1.msra.mxu0 0.0
  %93 = vmatprep.subr.mxu0 0.0
  %94 = vmatpush1.msra.mxu0 0.0
  %95 = vmatprep.subr.mxu0 0.0
  %96 = vmatpush1.msra.mxu0 0.0
  %97 = vmatprep.subr.mxu0 0.0
  %98 = vmatpush1.msra.mxu0 0.0
  %99 = vmatprep.subr.mxu0 0.0
  %100 = vmatpush1.msra.mxu0 0.0
  %101 = vmatprep.subr.mxu0 0.0
  %102 = vmatpush1.msra.mxu0 0.0
  %103 = vmatprep.subr.mxu0 0.0
  %104 = vmatpush1.msra.mxu0 0.0
  %105 = vmatprep.subr.mxu0 0.0
  %106 = vmatpush1.msra.mxu0 0.0
  %107 = vmatprep.subr.mxu0 0.0
  %108 = vmatpush1.msra.mxu0 0.0
  %109 = vmatprep.subr.mxu0 0.0
  %110 = vmatpush1.msra.mxu0 0.0
  %111 = vmatprep.subr.mxu0 0.0
  %112 = vmatpush1.msra.mxu0 0.0
  %113 = vmatprep.subr.mxu0 0.0
  %114 = vmatpush1.msra.mxu0 0.0
  %115 = vmatprep.mubr.f32.mxu0 0.0
  %116 = vmatmul.mubr.f32.gmra.mrb[0].mxu0 %v23
  %v117 = vpop.f32.mrb[0].mxu0
  %v118 = vadd.f32 %v49, %v117
  %v119 = vpop.f32.mrb[0].mxu0
  %120 = vmatprep.mubr.f32.mxu0 0.0
  %121 = vmatmul.mubr.f32.gmra.mrb[0].mxu0 %v24
  %v122 = vpop.f32.mrb[0].mxu0
  %v123 = vadd.f32 %v49, %v122
  %v124 = vpop.f32.mrb[0].mxu0
  %125 = vmatprep.mubr.f32.mxu0 0.0
  %126 = vmatmul.mubr.f32.gmra.mrb[0].mxu0 %v25
  %v127 = vpop.f32.mrb[0].mxu0
  %v128 = vadd.f32 %v49, %v127
  %v129 = vpop.f32.mrb[0].mxu0
  %130 = vmatprep.mubr.f32.mxu0 0.0
  %131 = vmatmul.mubr.f32.gmra.mrb[0].mxu0 %v26
  %v132 = vpop.f32.mrb[0].mxu0
  %v133 = vadd.f32 %v49, %v132
  %v134 = vpop.f32.mrb[0].mxu0
  %135 = vmatprep.mubr.f32.mxu0 0.0
  %136 = vmatmul.mubr.f32.gmra.mrb[0].mxu0 %v27
  %v137 = vpop.f32.mrb[0].mxu0
  %v138 = vadd.f32 %v49, %v137
  %v139 = vpop.f32.mrb[0].mxu0
  %140 = vdwg.mxu0
  %v141 = vld [vmem:[%s3] sm:$0xff]
  %v142 = vld [vmem:[%s3 + $0x8] sm:$0xff]
  %v143 = vld [vmem:[%s3 + $0x10] sm:$0xff]
  %v144 = vld [vmem:[%s3 + $0x18] sm:$0xff]
  %v145 = vld [vmem:[%s3 + $0x20] sm:$0xff]
  %v146 = vld [vmem:[%s3 + $0x28] sm:$0xff]
  %v147 = vld [vmem:[%s3 + $0x30] sm:$0xff]
  %v148 = vld [vmem:[%s3 + $0x38] sm:$0xff]
  %v149 = vld [vmem:[%s3 + $0x40] sm:$0xff]
  %v150 = vld [vmem:[%s3 + $0x48] sm:$0xff]
  %v151 = vld [vmem:[%s3 + $0x50] sm:$0xff]
  %v152 = vld [vmem:[%s3 + $0x58] sm:$0xff]
  %v153 = vld [vmem:[%s3 + $0x60] sm:$0xff]
  %v154 = vld [vmem:[%s3 + $0x68] sm:$0xff]
  %v155 = vld [vmem:[%s3 + $0x70] sm:$0xff]
  %v156 = vld [vmem:[%s3 + $0x78] sm:$0xff]
  %v157 = vtanh.pop %v118
  %158 = vmatprep.subr.mxu0 0.0
  %159 = vmatpush1.msra.mxu0 %v141
  %160 = vmatprep.subr.mxu0 0.0
  %161 = vmatpush1.msra.mxu0 %v142
  %162 = vmatprep.subr.mxu0 0.0
  %163 = vmatpush1.msra.mxu0 %v143
  %164 = vmatprep.subr.mxu0 0.0
  %165 = vmatpush1.msra.mxu0 %v144
  %166 = vmatprep.subr.mxu0 0.0
  %167 = vmatpush1.msra.mxu0 %v145
  %168 = vmatprep.subr.mxu0 0.0
  %169 = vmatpush1.msra.mxu0 %v146
  %170 = vmatprep.subr.mxu0 0.0
  %171 = vmatpush1.msra.mxu0 %v147
  %172 = vmatprep.subr.mxu0 0.0
  %173 = vmatpush1.msra.mxu0 %v148
  %174 = vmatprep.subr.mxu0 0.0
  %175 = vmatpush1.msra.mxu0 %v149
  %176 = vmatprep.subr.mxu0 0.0
  %177 = vmatpush1.msra.mxu0 %v150
  %178 = vmatprep.subr.mxu0 0.0
  %179 = vmatpush1.msra.mxu0 %v151
  %180 = vmatprep.subr.mxu0 0.0
  %181 = vmatpush1.msra.mxu0 %v152
  %182 = vmatprep.subr.mxu0 0.0
  %183 = vmatpush1.msra.mxu0 %v153
  %184 = vmatprep.subr.mxu0 0.0
  %185 = vmatpush1.msra.mxu0 %v154
  %186 = vmatprep.subr.mxu0 0.0
  %187 = vmatpush1.msra.mxu0 %v155
  %188 = vmatprep.subr.mxu0 0.0
  %189 = vmatpush1.msra.mxu0 %v156
  %190 = vmatprep.subr.mxu0 0.0
  %191 = vmatpush1.msra.mxu0 0.0
  %192 = vmatprep.subr.mxu0 0.0
  %193 = vmatpush1.msra.mxu0 0.0
  %194 = vmatprep.subr.mxu0 0.0
  %195 = vmatpush1.msra.mxu0 0.0
  %196 = vmatprep.subr.mxu0 0.0
  %197 = vmatpush1.msra.mxu0 0.0
  %198 = vmatprep.subr.mxu0 0.0
  %199 = vmatpush1.msra.mxu0 0.0
  %200 = vmatprep.subr.mxu0 0.0
  %201 = vmatpush1.msra.mxu0 0.0
  %202 = vmatprep.subr.mxu0 0.0
  %203 = vmatpush1.msra.mxu0 0.0
  %204 = vmatprep.subr.mxu0 0.0
  %205 = vmatpush1.msra.mxu0 0.0
  %206 = vmatprep.subr.mxu0 0.0
  %207 = vmatpush1.msra.mxu0 0.0
  %208 = vmatprep.subr.mxu0 0.0
  %209 = vmatpush1.msra.mxu0 0.0
  %210 = vmatprep.subr.mxu0 0.0
  %211 = vmatpush1.msra.mxu0 0.0
  %212 = vmatprep.subr.mxu0 0.0
  %213 = vmatpush1.msra.mxu0 0.0
  %214 = vmatprep.subr.mxu0 0.0
  %215 = vmatpush1.msra.mxu0 0.0
  %216 = vmatprep.subr.mxu0 0.0
  %217 = vmatpush1.msra.mxu0 0.0
  %218 = vmatprep.subr.mxu0 0.0
  %219 = vmatpush1.msra.mxu0 0.0
  %220 = vmatprep.subr.mxu0 0.0
  %221 = vmatpush1.msra.mxu0 0.0
  %222 = vmatprep.mubr.f32.mxu0 0.0
  %223 = vmatmul.mubr.f32.gmra.mrb[0].mxu0 %v157
  %v224 = vpop.f32.mrb[0].mxu0
  %v225 = vadd.f32 0.0, %v224
  %v226 = vpop.f32.mrb[0].mxu0
  %227 = vdwg.mxu0
  %v228 = vadd.f32 %v123, %v225
  %v229 = vtanh.pop %v228
  %230 = vmatprep.subr.mxu0 0.0
  %231 = vmatpush1.msra.mxu0 %v141
  %232 = vmatprep.subr.mxu0 0.0
  %233 = vmatpush1.msra.mxu0 %v142
  %234 = vmatprep.subr.mxu0 0.0
  %235 = vmatpush1.msra.mxu0 %v143
  %236 = vmatprep.subr.mxu0 0.0
  %237 = vmatpush1.msra.mxu0 %v144
  %238 = vmatprep.subr.mxu0 0.0
  %239 = vmatpush1.msra.mxu0 %v145
  %240 = vmatprep.subr.mxu0 0.0
  %241 = vmatpush1.msra.mxu0 %v146
  %242 = vmatprep.subr.mxu0 0.0
  %243 = vmatpush1.msra.mxu0 %v147
  %244 = vmatprep.subr.mxu0 0.0
  %245 = vmatpush1.msra.mxu0 %v148
  %246 = vmatprep.subr.mxu0 0.0
  %247 = vmatpush1.msra.mxu0 %v149
  %248 = vmatprep.subr.mxu0 0.0
  %249 = vmatpush1.msra.mxu0 %v150
  %250 = vmatprep.subr.mxu0 0.0
  %251 = vmatpush1.msra.mxu0 %v151
  %252 = vmatprep.subr.mxu0 0.0
  %253 = vmatpush1.msra.mxu0 %v152
  %254 = vmatprep.subr.mxu0 0.0
  %255 = vmatpush1.msra.mxu0 %v153
  %256 = vmatprep.subr.mxu0 0.0
  %257 = vmatpush1.msra.mxu0 %v154
  %258 = vmatprep.subr.mxu0 0.0
  %259 = vmatpush1.msra.mxu0 %v155
  %260 = vmatprep.subr.mxu0 0.0
  %261 = vmatpush1.msra.mxu0 %v156
  %262 = vmatprep.subr.mxu0 0.0
  %263 = vmatpush1.msra.mxu0 0.0
  %264 = vmatprep.subr.mxu0 0.0
  %265 = vmatpush1.msra.mxu0 0.0
  %266 = vmatprep.subr.mxu0 0.0
  %267 = vmatpush1.msra.mxu0 0.0
  %268 = vmatprep.subr.mxu0 0.0
  %269 = vmatpush1.msra.mxu0 0.0
  %270 = vmatprep.subr.mxu0 0.0
  %271 = vmatpush1.msra.mxu0 0.0
  %272 = vmatprep.subr.mxu0 0.0
  %273 = vmatpush1.msra.mxu0 0.0
  %274 = vmatprep.subr.mxu0 0.0
  %275 = vmatpush1.msra.mxu0 0.0
  %276 = vmatprep.subr.mxu0 0.0
  %277 = vmatpush1.msra.mxu0 0.0
  %278 = vmatprep.subr.mxu0 0.0
  %279 = vmatpush1.msra.mxu0 0.0
  %280 = vmatprep.subr.mxu0 0.0
  %281 = vmatpush1.msra.mxu0 0.0
  %282 = vmatprep.subr.mxu0 0.0
  %283 = vmatpush1.msra.mxu0 0.0
  %284 = vmatprep.subr.mxu0 0.0
  %285 = vmatpush1.msra.mxu0 0.0
  %286 = vmatprep.subr.mxu0 0.0
  %287 = vmatpush1.msra.mxu0 0.0
  %288 = vmatprep.subr.mxu0 0.0
  %289 = vmatpush1.msra.mxu0 0.0
  %290 = vmatprep.subr.mxu0 0.0
  %291 = vmatpush1.msra.mxu0 0.0
  %292 = vmatprep.subr.mxu0 0.0
  %293 = vmatpush1.msra.mxu0 0.0
  %294 = vmatprep.mubr.f32.mxu0 0.0
  %295 = vmatmul.mubr.f32.gmra.mrb[0].mxu0 %v229
  %v296 = vpop.f32.mrb[0].mxu0
  %v297 = vadd.f32 0.0, %v296
  %v298 = vpop.f32.mrb[0].mxu0
  %299 = vdwg.mxu0
  %v300 = vadd.f32 %v128, %v297
  %v301 = vtanh.pop %v300
  %302 = vmatprep.subr.mxu0 0.0
  %303 = vmatpush1.msra.mxu0 %v141
  %304 = vmatprep.subr.mxu0 0.0
  %305 = vmatpush1.msra.mxu0 %v142
  %306 = vmatprep.subr.mxu0 0.0
  %307 = vmatpush1.msra.mxu0 %v143
  %308 = vmatprep.subr.mxu0 0.0
  %309 = vmatpush1.msra.mxu0 %v144
  %310 = vmatprep.subr.mxu0 0.0
  %311 = vmatpush1.msra.mxu0 %v145
  %312 = vmatprep.subr.mxu0 0.0
  %313 = vmatpush1.msra.mxu0 %v146
  %314 = vmatprep.subr.mxu0 0.0
  %315 = vmatpush1.msra.mxu0 %v147
  %316 = vmatprep.subr.mxu0 0.0
  %317 = vmatpush1.msra.mxu0 %v148
  %318 = vmatprep.subr.mxu0 0.0
  %319 = vmatpush1.msra.mxu0 %v149
  %320 = vmatprep.subr.mxu0 0.0
  %321 = vmatpush1.msra.mxu0 %v150
  %322 = vmatprep.subr.mxu0 0.0
  %323 = vmatpush1.msra.mxu0 %v151
  %324 = vmatprep.subr.mxu0 0.0
  %325 = vmatpush1.msra.mxu0 %v152
  %326 = vmatprep.subr.mxu0 0.0
  %327 = vmatpush1.msra.mxu0 %v153
  %328 = vmatprep.subr.mxu0 0.0
  %329 = vmatpush1.msra.mxu0 %v154
  %330 = vmatprep.subr.mxu0 0.0
  %331 = vmatpush1.msra.mxu0 %v155
  %332 = vmatprep.subr.mxu0 0.0
  %333 = vmatpush1.msra.mxu0 %v156
  %334 = vmatprep.subr.mxu0 0.0
  %335 = vmatpush1.msra.mxu0 0.0
  %336 = vmatprep.subr.mxu0 0.0
  %337 = vmatpush1.msra.mxu0 0.0
  %338 = vmatprep.subr.mxu0 0.0
  %339 = vmatpush1.msra.mxu0 0.0
  %340 = vmatprep.subr.mxu0 0.0
  %341 = vmatpush1.msra.mxu0 0.0
  %342 = vmatprep.subr.mxu0 0.0
  %343 = vmatpush1.msra.mxu0 0.0
  %344 = vmatprep.subr.mxu0 0.0
  %345 = vmatpush1.msra.mxu0 0.0
  %346 = vmatprep.subr.mxu0 0.0
  %347 = vmatpush1.msra.mxu0 0.0
  %348 = vmatprep.subr.mxu0 0.0
  %349 = vmatpush1.msra.mxu0 0.0
  %350 = vmatprep.subr.mxu0 0.0
  %351 = vmatpush1.msra.mxu0 0.0
  %352 = vmatprep.subr.mxu0 0.0
  %353 = vmatpush1.msra.mxu0 0.0
  %354 = vmatprep.subr.mxu0 0.0
  %355 = vmatpush1.msra.mxu0 0.0
  %356 = vmatprep.subr.mxu0 0.0
  %357 = vmatpush1.msra.mxu0 0.0
  %358 = vmatprep.subr.mxu0 0.0
  %359 = vmatpush1.msra.mxu0 0.0
  %360 = vmatprep.subr.mxu0 0.0
  %361 = vmatpush1.msra.mxu0 0.0
  %362 = vmatprep.subr.mxu0 0.0
  %363 = vmatpush1.msra.mxu0 0.0
  %364 = vmatprep.subr.mxu0 0.0
  %365 = vmatpush1.msra.mxu0 0.0
  %366 = vmatprep.mubr.f32.mxu0 0.0
  %367 = vmatmul.mubr.f32.gmra.mrb[0].mxu0 %v301
  %v368 = vpop.f32.mrb[0].mxu0
  %v369 = vadd.f32 0.0, %v368
  %v370 = vpop.f32.mrb[0].mxu0
  %371 = vdwg.mxu0
  %v372 = vadd.f32 %v133, %v369
  %v373 = vtanh.pop %v372
  %374 = vmatprep.subr.mxu0 0.0
  %375 = vmatpush1.msra.mxu0 %v141
  %376 = vmatprep.subr.mxu0 0.0
  %377 = vmatpush1.msra.mxu0 %v142
  %378 = vmatprep.subr.mxu0 0.0
  %379 = vmatpush1.msra.mxu0 %v143
  %380 = vmatprep.subr.mxu0 0.0
  %381 = vmatpush1.msra.mxu0 %v144
  %382 = vmatprep.subr.mxu0 0.0
  %383 = vmatpush1.msra.mxu0 %v145
  %384 = vmatprep.subr.mxu0 0.0
  %385 = vmatpush1.msra.mxu0 %v146
  %386 = vmatprep.subr.mxu0 0.0
  %387 = vmatpush1.msra.mxu0 %v147
  %388 = vmatprep.subr.mxu0 0.0
  %389 = vmatpush1.msra.mxu0 %v148
  %390 = vmatprep.subr.mxu0 0.0
  %391 = vmatpush1.msra.mxu0 %v149
  %392 = vmatprep.subr.mxu0 0.0
  %393 = vmatpush1.msra.mxu0 %v150
  %394 = vmatprep.subr.mxu0 0.0
  %395 = vmatpush1.msra.mxu0 %v151
  %396 = vmatprep.subr.mxu0 0.0
  %397 = vmatpush1.msra.mxu0 %v152
  %398 = vmatprep.subr.mxu0 0.0
  %399 = vmatpush1.msra.mxu0 %v153
  %400 = vmatprep.subr.mxu0 0.0
  %401 = vmatpush1.msra.mxu0 %v154
  %402 = vmatprep.subr.mxu0 0.0
  %403 = vmatpush1.msra.mxu0 %v155
  %404 = vmatprep.subr.mxu0 0.0
  %405 = vmatpush1.msra.mxu0 %v156
  %406 = vmatprep.subr.mxu0 0.0
  %407 = vmatpush1.msra.mxu0 0.0
  %408 = vmatprep.subr.mxu0 0.0
  %409 = vmatpush1.msra.mxu0 0.0
  %410 = vmatprep.subr.mxu0 0.0
  %411 = vmatpush1.msra.mxu0 0.0
  %412 = vmatprep.subr.mxu0 0.0
  %413 = vmatpush1.msra.mxu0 0.0
  %414 = vmatprep.subr.mxu0 0.0
  %415 = vmatpush1.msra.mxu0 0.0
  %416 = vmatprep.subr.mxu0 0.0
  %417 = vmatpush1.msra.mxu0 0.0
  %418 = vmatprep.subr.mxu0 0.0
  %419 = vmatpush1.msra.mxu0 0.0
  %420 = vmatprep.subr.mxu0 0.0
  %421 = vmatpush1.msra.mxu0 0.0
  %422 = vmatprep.subr.mxu0 0.0
  %423 = vmatpush1.msra.mxu0 0.0
  %424 = vmatprep.subr.mxu0 0.0
  %425 = vmatpush1.msra.mxu0 0.0
  %426 = vmatprep.subr.mxu0 0.0
  %427 = vmatpush1.msra.mxu0 0.0
  %428 = vmatprep.subr.mxu0 0.0
  %429 = vmatpush1.msra.mxu0 0.0
  %430 = vmatprep.subr.mxu0 0.0
  %431 = vmatpush1.msra.mxu0 0.0
  %432 = vmatprep.subr.mxu0 0.0
  %433 = vmatpush1.msra.mxu0 0.0
  %434 = vmatprep.subr.mxu0 0.0
  %435 = vmatpush1.msra.mxu0 0.0
  %436 = vmatprep.subr.mxu0 0.0
  %437 = vmatpush1.msra.mxu0 0.0
  %438 = vmatprep.mubr.f32.mxu0 0.0
  %439 = vmatmul.mubr.f32.gmra.mrb[0].mxu0 %v373
  %v440 = vpop.f32.mrb[0].mxu0
  %v441 = vadd.f32 0.0, %v440
  %v442 = vpop.f32.mrb[0].mxu0
  %443 = vdwg.mxu0
  %v444 = vadd.f32 %v138, %v441
  %v445 = vtanh.pop %v444
  %v446 = vld [vmem:[%s4] sm:$0xff]
  %v447 = vld [vmem:[%s4 + $0x8] sm:$0xff]
  %v448 = vld [vmem:[%s4 + $0x10] sm:$0xff]
  %v449 = vld [vmem:[%s4 + $0x18] sm:$0xff]
  %v450 = vld [vmem:[%s4 + $0x20] sm:$0xff]
  %v451 = vld [vmem:[%s4 + $0x28] sm:$0xff]
  %v452 = vld [vmem:[%s4 + $0x30] sm:$0xff]
  %v453 = vld [vmem:[%s4 + $0x38] sm:$0xff]
  %v454 = vld [vmem:[%s4 + $0x40] sm:$0xff]
  %v455 = vld [vmem:[%s4 + $0x48] sm:$0xff]
  %v456 = vld [vmem:[%s4 + $0x50] sm:$0xff]
  %v457 = vld [vmem:[%s4 + $0x58] sm:$0xff]
  %v458 = vld [vmem:[%s4 + $0x60] sm:$0xff]
  %v459 = vld [vmem:[%s4 + $0x68] sm:$0xff]
  %v460 = vld [vmem:[%s4 + $0x70] sm:$0xff]
  %v461 = vld [vmem:[%s4 + $0x78] sm:$0xff]
  %v462 = vld [vmem:[%s5] sm:$0x1]
  %v464 = vlaneseq
  %v465 = vshrl.u32 %v464, 7
  %v466 = vsub.s32 0, %v465
  %v467 = vrot.slane %v462, %v466
  %469 = vmatprep.subr.mxu0 0.0
  %470 = vmatpush1.msra.mxu0 %v446
  %471 = vmatprep.subr.mxu0 0.0
  %472 = vmatpush1.msra.mxu0 %v447
  %473 = vmatprep.subr.mxu0 0.0
  %474 = vmatpush1.msra.mxu0 %v448
  %475 = vmatprep.subr.mxu0 0.0
  %476 = vmatpush1.msra.mxu0 %v449
  %477 = vmatprep.subr.mxu0 0.0
  %478 = vmatpush1.msra.mxu0 %v450
  %479 = vmatprep.subr.mxu0 0.0
  %480 = vmatpush1.msra.mxu0 %v451
  %481 = vmatprep.subr.mxu0 0.0
  %482 = vmatpush1.msra.mxu0 %v452
  %483 = vmatprep.subr.mxu0 0.0
  %484 = vmatpush1.msra.mxu0 %v453
  %485 = vmatprep.subr.mxu0 0.0
  %486 = vmatpush1.msra.mxu0 %v454
  %487 = vmatprep.subr.mxu0 0.0
  %488 = vmatpush1.msra.mxu0 %v455
  %489 = vmatprep.subr.mxu0 0.0
  %490 = vmatpush1.msra.mxu0 %v456
  %491 = vmatprep.subr.mxu0 0.0
  %492 = vmatpush1.msra.mxu0 %v457
  %493 = vmatprep.subr.mxu0 0.0
  %494 = vmatpush1.msra.mxu0 %v458
  %495 = vmatprep.subr.mxu0 0.0
  %496 = vmatpush1.msra.mxu0 %v459
  %497 = vmatprep.subr.mxu0 0.0
  %498 = vmatpush1.msra.mxu0 %v460
  %499 = vmatprep.subr.mxu0 0.0
  %500 = vmatpush1.msra.mxu0 %v461
  %501 = vmatprep.subr.mxu0 0.0
  %502 = vmatpush1.msra.mxu0 0.0
  %503 = vmatprep.subr.mxu0 0.0
  %504 = vmatpush1.msra.mxu0 0.0
  %505 = vmatprep.subr.mxu0 0.0
  %506 = vmatpush1.msra.mxu0 0.0
  %507 = vmatprep.subr.mxu0 0.0
  %508 = vmatpush1.msra.mxu0 0.0
  %509 = vmatprep.subr.mxu0 0.0
  %510 = vmatpush1.msra.mxu0 0.0
  %511 = vmatprep.subr.mxu0 0.0
  %512 = vmatpush1.msra.mxu0 0.0
  %513 = vmatprep.subr.mxu0 0.0
  %514 = vmatpush1.msra.mxu0 0.0
  %515 = vmatprep.subr.mxu0 0.0
  %516 = vmatpush1.msra.mxu0 0.0
  %517 = vmatprep.subr.mxu0 0.0
  %518 = vmatpush1.msra.mxu0 0.0
  %519 = vmatprep.subr.mxu0 0.0
  %520 = vmatpush1.msra.mxu0 0.0
  %521 = vmatprep.subr.mxu0 0.0
  %522 = vmatpush1.msra.mxu0 0.0
  %523 = vmatprep.subr.mxu0 0.0
  %524 = vmatpush1.msra.mxu0 0.0
  %525 = vmatprep.subr.mxu0 0.0
  %526 = vmatpush1.msra.mxu0 0.0
  %527 = vmatprep.subr.mxu0 0.0
  %528 = vmatpush1.msra.mxu0 0.0
  %529 = vmatprep.subr.mxu0 0.0
  %530 = vmatpush1.msra.mxu0 0.0
  %531 = vmatprep.subr.mxu0 0.0
  %532 = vmatpush1.msra.mxu0 0.0
  %533 = vmatprep.mubr.f32.mxu0 0.0
  %534 = vmatmul.mubr.f32.gmra.mrb[0].mxu0 %v157
  %v535 = vpop.f32.mrb[0].mxu0
  %v536 = vadd.f32 %v467, %v535
  %v537 = vpop.f32.mrb[0].mxu0
  %538 = vmatprep.mubr.f32.mxu0 0.0
  %539 = vmatmul.mubr.f32.gmra.mrb[0].mxu0 %v229
  %v540 = vpop.f32.mrb[0].mxu0
  %v541 = vadd.f32 %v467, %v540
  %v542 = vpop.f32.mrb[0].mxu0
  %543 = vmatprep.mubr.f32.mxu0 0.0
  %544 = vmatmul.mubr.f32.gmra.mrb[0].mxu0 %v301
  %v545 = vpop.f32.mrb[0].mxu0
  %v546 = vadd.f32 %v467, %v545
  %v547 = vpop.f32.mrb[0].mxu0
  %548 = vmatprep.mubr.f32.mxu0 0.0
  %549 = vmatmul.mubr.f32.gmra.mrb[0].mxu0 %v373
  %v550 = vpop.f32.mrb[0].mxu0
  %v551 = vadd.f32 %v467, %v550
  %v552 = vpop.f32.mrb[0].mxu0
  %553 = vmatprep.mubr.f32.mxu0 0.0
  %554 = vmatmul.mubr.f32.gmra.mrb[0].mxu0 %v445
  %v555 = vpop.f32.mrb[0].mxu0
  %v556 = vadd.f32 %v467, %v555
  %v557 = vpop.f32.mrb[0].mxu0
  %558 = vdwg.mxu0
  %559 = vst [vmem:[%s6] sm:$0xff] %v536
  %560 = vst [vmem:[%s6 + $0x8] sm:$0xff] %v541
  %561 = vst [vmem:[%s6 + $0x10] sm:$0xff] %v546
  %562 = vst [vmem:[%s6 + $0x18] sm:$0xff] %v551
  %563 = vst [vmem:[%s6 + $0x20] sm:$0xff] %v556
  // Predicated region
  $region26: #{rnn_forward.1} parent=0 // pred_check
    _
  $region27: #{rnn_forward.1} parent=0 // pred_check_branch
    %565 = sbr.rel (0) target = $region29
  $region28: #{rnn_forward.1} parent=0 // pred_region
    _
  $region29: #{rnn_forward.1} parent=0 // pred_fallthru
    _
  // Predicated region
  $region30: #{rnn_forward.1} parent=0 // pred_check
    _
  $region31: #{rnn_forward.1} parent=0 // pred_check_branch
    %567 = sbr.rel (0) target = $region33
  $region32: #{rnn_forward.1} parent=0 // pred_region
    _
  $region33: #{rnn_forward.1} parent=0 // pred_fallthru
    _

</llo_original>
